<compile_context>
chip_gen: v7x
topology: tpu7x:2x2x1
jax: 0.10.0
libtpu: 0.0.40
codegen_flags: <defaults>
</compile_context>

<pallas_src>
import functools

import jax
import jax.numpy as jnp
from jax.experimental import pallas as pl
from jax.experimental.pallas import tpu as pltpu


def mlp_kernel(x_ref, w1_ref, b1_ref, w2_ref, b2_ref, w3_ref, b3_ref,
               w4_ref, b4_ref, o_ref):
    bf16 = jnp.bfloat16
    # Layer 1: Linear + ReLU  (Dropout = identity in eval mode)
    h = jnp.dot(x_ref[...], w1_ref[...],
                preferred_element_type=jnp.float32) + b1_ref[...]
    h = jnp.maximum(h, 0.0)
    # Layer 2: Linear + ReLU
    h = jnp.dot(h.astype(bf16), w2_ref[...],
                preferred_element_type=jnp.float32) + b2_ref[...]
    h = jnp.maximum(h, 0.0)
    # Layer 3: Linear + ReLU
    h = jnp.dot(h.astype(bf16), w3_ref[...],
                preferred_element_type=jnp.float32) + b3_ref[...]
    h = jnp.maximum(h, 0.0)
    # Output layer: Linear + Sigmoid (padded lane-dense output)
    logits = jnp.dot(h.astype(bf16), w4_ref[...],
                     preferred_element_type=jnp.float32) + b4_ref[...]
    o_ref[...] = jax.nn.sigmoid(logits).astype(o_ref.dtype)


@functools.partial(jax.jit, static_argnames=("batch_tile",))
def mlp_forward(x, params, *, batch_tile=256):
    w1, b1, w2, b2, w3, b3, w4, b4 = params
    B, F = x.shape
    L = w4.shape[1]

    # Lane-dense output: pad labels up to a multiple of 128 so output stores
    # are unmasked full-lane vst's (biggest single lever for narrow outputs).
    L_pad = 128 * pl.cdiv(L, 128)
    if L_pad != L:
        w4 = jnp.pad(w4, ((0, 0), (0, L_pad - L)))
        b4 = jnp.pad(b4, ((0, 0), (0, L_pad - L)))

    # Tail handling: zero-pad the batch to a multiple of batch_tile.
    B_pad = batch_tile * pl.cdiv(B, batch_tile)
    if B_pad != B:
        x = jnp.pad(x, ((0, B_pad - B), (0, 0)))

    # bf16 operands for the MXU (f32 accumulation requested in-kernel).
    bf16 = jnp.bfloat16
    x = x.astype(bf16)
    w1, w2, w3, w4 = (w.astype(bf16) for w in (w1, w2, w3, w4))

    grid = (B_pad // batch_tile,)

    # Weights/biases: whole arrays resident in VMEM, untiled (no pipeline
    # double-buffering of constant operands).
    vmem_full = pl.BlockSpec(memory_space=pltpu.MemorySpace.VMEM)
    in_specs = [
        pl.BlockSpec((batch_tile, F), lambda i: (i, 0)),   # x tiled over batch
        vmem_full, vmem_full,   # w1, b1
        vmem_full, vmem_full,   # w2, b2
        vmem_full, vmem_full,   # w3, b3
        vmem_full, vmem_full,   # w4, b4
    ]
    out_specs = pl.BlockSpec((batch_tile, L_pad), lambda i: (i, 0))

    # VMEM use at batch_tile=256 is well under the default scoped limit on all
    # of v5e/v6e/v7x; raise vmem_limit_bytes only if pushing the tile to many
    # thousands of rows.
    out = pl.pallas_call(
        mlp_kernel,
        out_shape=jax.ShapeDtypeStruct((B_pad, L_pad), jnp.float32),
        grid_spec=pltpu.PrefetchScalarGridSpec(
            num_scalar_prefetch=0,
            grid=grid,
            in_specs=in_specs,
            out_specs=out_specs,
        ),
        compiler_params=pltpu.CompilerParams(
            dimension_semantics=("parallel",)),
    )(x, w1, b1, w2, b2, w3, b3, w4, b4)

    return out[:B, :L]


def init_params(key, no_features, no_hidden, no_labels):
    """Deterministic init mimicking nn.Linear's U(-1/sqrt(fan_in), +1/sqrt(fan_in))."""
    dims = [(no_features, no_hidden),
            (no_hidden, no_hidden),
            (no_hidden, no_hidden),
            (no_hidden, no_labels)]
    params = []
    for (fan_in, fan_out) in dims:
        key, kw, kb = jax.random.split(key, 3)
        bound = 1.0 / jnp.sqrt(fan_in)
        w = jax.random.uniform(kw, (fan_in, fan_out), jnp.float32, -bound, bound)
        b = jax.random.uniform(kb, (1, fan_out), jnp.float32, -bound, bound)
        params += [w, b]
    return tuple(params)


def mlp_reference(x, params):
    """Plain-JAX f32 reference (eval-mode dropout = identity)."""
    w1, b1, w2, b2, w3, b3, w4, b4 = params
    h = jnp.maximum(x @ w1 + b1, 0.0)
    h = jnp.maximum(h @ w2 + b2, 0.0)
    h = jnp.maximum(h @ w3 + b3, 0.0)
    return jax.nn.sigmoid(h @ w4 + b4)


if __name__ == "__main__":
    no_features, no_hidden, no_labels = 32, 64, 8
    batch = 16   # deliberately NOT a multiple of batch_tile -> exercises padding

    key = jax.random.PRNGKey(0)
    key, kx = jax.random.split(key)
    x = jax.random.normal(kx, (batch, no_features), jnp.float32)
    params = init_params(key, no_features, no_hidden, no_labels)

    out = mlp_forward(x, params)          # default batch_tile=256
    out = jax.block_until_ready(out)

    ref = mlp_reference(x, params)
    assert out.shape == (batch, no_labels)
    # bf16 MXU inputs with f32 accumulation vs. pure-f32 reference -> loose tol.
    assert jnp.allclose(out, ref, atol=2e-2, rtol=2e-2), "mismatch vs reference"

    print("KERNEL_OK")
</pallas_src>

<mosaic_0001>
module attributes {stable_mosaic.version = 11 : i64} {
  func.func @mlp_kernel(%arg0: i32, %arg1: memref<256x32xbf16, #tpu.memory_space<vmem>>, %arg2: memref<32x64xbf16, #tpu.memory_space<vmem>>, %arg3: memref<1x64xf32, #tpu.memory_space<vmem>>, %arg4: memref<64x64xbf16, #tpu.memory_space<vmem>>, %arg5: memref<1x64xf32, #tpu.memory_space<vmem>>, %arg6: memref<64x64xbf16, #tpu.memory_space<vmem>>, %arg7: memref<1x64xf32, #tpu.memory_space<vmem>>, %arg8: memref<64x128xbf16, #tpu.memory_space<vmem>>, %arg9: memref<1x128xf32, #tpu.memory_space<vmem>>, %arg10: memref<256x128xf32, #tpu.memory_space<vmem>>) attributes {dimension_semantics = [#tpu.dimension_semantics<parallel>], iteration_bounds = array<i64: 1>, scalar_prefetch = 0 : i64, scratch_operands = 0 : i64, tpu.core_type = #tpu.core_type<tc>, window_params = [{transform_indices = @transform_0, window_bounds = array<i64: 256, 32>}, {pipeline_mode = #tpu.pipeline_mode<synchronous>, transform_indices = @transform_1, window_bounds = array<i64: 32, 64>}, {pipeline_mode = #tpu.pipeline_mode<synchronous>, transform_indices = @transform_2, window_bounds = array<i64: 1, 64>}, {pipeline_mode = #tpu.pipeline_mode<synchronous>, transform_indices = @transform_3, window_bounds = array<i64: 64, 64>}, {pipeline_mode = #tpu.pipeline_mode<synchronous>, transform_indices = @transform_4, window_bounds = array<i64: 1, 64>}, {pipeline_mode = #tpu.pipeline_mode<synchronous>, transform_indices = @transform_5, window_bounds = array<i64: 64, 64>}, {pipeline_mode = #tpu.pipeline_mode<synchronous>, transform_indices = @transform_6, window_bounds = array<i64: 1, 64>}, {pipeline_mode = #tpu.pipeline_mode<synchronous>, transform_indices = @transform_7, window_bounds = array<i64: 64, 128>}, {pipeline_mode = #tpu.pipeline_mode<synchronous>, transform_indices = @transform_8, window_bounds = array<i64: 1, 128>}, {transform_indices = @transform_9, window_bounds = array<i64: 256, 128>}]} {
    %c0 = arith.constant 0 : index
    %c0_0 = arith.constant 0 : index
    %0 = vector.load %arg1[%c0, %c0_0] : memref<256x32xbf16, #tpu.memory_space<vmem>>, vector<256x32xbf16>
    %c0_1 = arith.constant 0 : index
    %c0_2 = arith.constant 0 : index
    %1 = vector.load %arg2[%c0_1, %c0_2] : memref<32x64xbf16, #tpu.memory_space<vmem>>, vector<32x64xbf16>
    %cst = arith.constant dense<0.000000e+00> : vector<256x64xf32>
    %2 = tpu.matmul %0, %1, %cst {dimension_numbers = #tpu.dot_dimension_numbers<[1], [0], [0], [1], [0, 0, 1, 1], [], []>} : vector<256x32xbf16>, vector<32x64xbf16>, vector<256x64xf32> -> vector<256x64xf32>
    %c0_3 = arith.constant 0 : index
    %c0_4 = arith.constant 0 : index
    %3 = vector.load %arg3[%c0_3, %c0_4] : memref<1x64xf32, #tpu.memory_space<vmem>>, vector<1x64xf32>
    %4 = vector.broadcast %3 : vector<1x64xf32> to vector<256x64xf32>
    %5 = arith.addf %2, %4 : vector<256x64xf32>
    %cst_5 = arith.constant 0.000000e+00 : f32
    %6 = vector.broadcast %cst_5 : f32 to vector<256x64xf32>
    %7 = arith.maximumf %5, %6 : vector<256x64xf32>
    %8 = arith.truncf %7 : vector<256x64xf32> to vector<256x64xbf16>
    %c0_6 = arith.constant 0 : index
    %c0_7 = arith.constant 0 : index
    %9 = vector.load %arg4[%c0_6, %c0_7] : memref<64x64xbf16, #tpu.memory_space<vmem>>, vector<64x64xbf16>
    %cst_8 = arith.constant dense<0.000000e+00> : vector<256x64xf32>
    %10 = tpu.matmul %8, %9, %cst_8 {dimension_numbers = #tpu.dot_dimension_numbers<[1], [0], [0], [1], [0, 0, 1, 1], [], []>} : vector<256x64xbf16>, vector<64x64xbf16>, vector<256x64xf32> -> vector<256x64xf32>
    %c0_9 = arith.constant 0 : index
    %c0_10 = arith.constant 0 : index
    %11 = vector.load %arg5[%c0_9, %c0_10] : memref<1x64xf32, #tpu.memory_space<vmem>>, vector<1x64xf32>
    %12 = vector.broadcast %11 : vector<1x64xf32> to vector<256x64xf32>
    %13 = arith.addf %10, %12 : vector<256x64xf32>
    %cst_11 = arith.constant 0.000000e+00 : f32
    %14 = vector.broadcast %cst_11 : f32 to vector<256x64xf32>
    %15 = arith.maximumf %13, %14 : vector<256x64xf32>
    %16 = arith.truncf %15 : vector<256x64xf32> to vector<256x64xbf16>
    %c0_12 = arith.constant 0 : index
    %c0_13 = arith.constant 0 : index
    %17 = vector.load %arg6[%c0_12, %c0_13] : memref<64x64xbf16, #tpu.memory_space<vmem>>, vector<64x64xbf16>
    %cst_14 = arith.constant dense<0.000000e+00> : vector<256x64xf32>
    %18 = tpu.matmul %16, %17, %cst_14 {dimension_numbers = #tpu.dot_dimension_numbers<[1], [0], [0], [1], [0, 0, 1, 1], [], []>} : vector<256x64xbf16>, vector<64x64xbf16>, vector<256x64xf32> -> vector<256x64xf32>
    %c0_15 = arith.constant 0 : index
    %c0_16 = arith.constant 0 : index
    %19 = vector.load %arg7[%c0_15, %c0_16] : memref<1x64xf32, #tpu.memory_space<vmem>>, vector<1x64xf32>
    %20 = vector.broadcast %19 : vector<1x64xf32> to vector<256x64xf32>
    %21 = arith.addf %18, %20 : vector<256x64xf32>
    %cst_17 = arith.constant 0.000000e+00 : f32
    %22 = vector.broadcast %cst_17 : f32 to vector<256x64xf32>
    %23 = arith.maximumf %21, %22 : vector<256x64xf32>
    %24 = arith.truncf %23 : vector<256x64xf32> to vector<256x64xbf16>
    %c0_18 = arith.constant 0 : index
    %c0_19 = arith.constant 0 : index
    %25 = vector.load %arg8[%c0_18, %c0_19] : memref<64x128xbf16, #tpu.memory_space<vmem>>, vector<64x128xbf16>
    %cst_20 = arith.constant dense<0.000000e+00> : vector<256x128xf32>
    %26 = tpu.matmul %24, %25, %cst_20 {dimension_numbers = #tpu.dot_dimension_numbers<[1], [0], [0], [1], [0, 0, 1, 1], [], []>} : vector<256x64xbf16>, vector<64x128xbf16>, vector<256x128xf32> -> vector<256x128xf32>
    %c0_21 = arith.constant 0 : index
    %c0_22 = arith.constant 0 : index
    %27 = vector.load %arg9[%c0_21, %c0_22] : memref<1x128xf32, #tpu.memory_space<vmem>>, vector<1x128xf32>
    %28 = vector.broadcast %27 : vector<1x128xf32> to vector<256x128xf32>
    %29 = arith.addf %26, %28 : vector<256x128xf32>
    %30 = arith.negf %29 : vector<256x128xf32>
    %31 = math.exp %30 : vector<256x128xf32>
    %cst_23 = arith.constant 1.000000e+00 : f32
    %32 = vector.broadcast %cst_23 : f32 to vector<256x128xf32>
    %33 = arith.addf %32, %31 : vector<256x128xf32>
    %34 = arith.divf %32, %33 : vector<256x128xf32>
    %c0_24 = arith.constant 0 : index
    %c0_25 = arith.constant 0 : index
    %35 = vector.load %arg10[%c0_24, %c0_25] : memref<256x128xf32, #tpu.memory_space<vmem>>, vector<256x128xf32>
    tpu.vector_store %arg10[%c0_24, %c0_25], %34 {strides = array<i32>} : memref<256x128xf32, #tpu.memory_space<vmem>>, vector<256x128xf32>,
    return
  }
  func.func @transform_0(%arg0: i32) -> (i32, i32) {
    %c0_i32 = arith.constant 0 : i32
    %c0_i32_0 = arith.constant 0 : i32
    return %arg0, %c0_i32 : i32, i32
  }
  func.func @transform_1(%arg0: i32) -> (i32, i32) {
    %c0_i32 = arith.constant 0 : i32
    %c0_i32_0 = arith.constant 0 : i32
    %c0_i32_1 = arith.constant 0 : i32
    return %c0_i32, %c0_i32_0 : i32, i32
  }
  func.func @transform_2(%arg0: i32) -> (i32, i32) {
    %c0_i32 = arith.constant 0 : i32
    %c0_i32_0 = arith.constant 0 : i32
    %c0_i32_1 = arith.constant 0 : i32
    return %c0_i32, %c0_i32_0 : i32, i32
  }
  func.func @transform_3(%arg0: i32) -> (i32, i32) {
    %c0_i32 = arith.constant 0 : i32
    %c0_i32_0 = arith.constant 0 : i32
    %c0_i32_1 = arith.constant 0 : i32
    return %c0_i32, %c0_i32_0 : i32, i32
  }
  func.func @transform_4(%arg0: i32) -> (i32, i32) {
    %c0_i32 = arith.constant 0 : i32
    %c0_i32_0 = arith.constant 0 : i32
    %c0_i32_1 = arith.constant 0 : i32
    return %c0_i32, %c0_i32_0 : i32, i32
  }
  func.func @transform_5(%arg0: i32) -> (i32, i32) {
    %c0_i32 = arith.constant 0 : i32
    %c0_i32_0 = arith.constant 0 : i32
    %c0_i32_1 = arith.constant 0 : i32
    return %c0_i32, %c0_i32_0 : i32, i32
  }
  func.func @transform_6(%arg0: i32) -> (i32, i32) {
    %c0_i32 = arith.constant 0 : i32
    %c0_i32_0 = arith.constant 0 : i32
    %c0_i32_1 = arith.constant 0 : i32
    return %c0_i32, %c0_i32_0 : i32, i32
  }
  func.func @transform_7(%arg0: i32) -> (i32, i32) {
    %c0_i32 = arith.constant 0 : i32
    %c0_i32_0 = arith.constant 0 : i32
    %c0_i32_1 = arith.constant 0 : i32
    return %c0_i32, %c0_i32_0 : i32, i32
  }
  func.func @transform_8(%arg0: i32) -> (i32, i32) {
    %c0_i32 = arith.constant 0 : i32
    %c0_i32_0 = arith.constant 0 : i32
    %c0_i32_1 = arith.constant 0 : i32
    return %c0_i32, %c0_i32_0 : i32, i32
  }
  func.func @transform_9(%arg0: i32) -> (i32, i32) {
    %c0_i32 = arith.constant 0 : i32
    %c0_i32_0 = arith.constant 0 : i32
    return %arg0, %c0_i32 : i32, i32
  }
}

</mosaic_0001>

<llo_original>
// kernel: mlp_forward.1
$region0: #{mlp_forward.1}
  #allocation0 [shape = 'u32[]', space=smem, size = 0x4, offset = 0x4, fixed_abs, tag = 'smem constant byte address 0x4 - core index']
  #allocation1 [shape = 'u32[144,128]{1,0:T(1,128)}', space=vmem, size = 0x12000, scoped, tag = 'internal scratch']
  %s0 = inlined_call_operand.vmem [shape: bf16[256,32], index: 0, kind: input, shape index: {}]
  %s1 = inlined_call_operand.vmem [shape: bf16[32,64], index: 1, kind: input, shape index: {}]
  %s2 = inlined_call_operand.vmem [shape: f32[1,64], index: 2, kind: input, shape index: {}]
  %s3 = inlined_call_operand.vmem [shape: bf16[64,64], index: 3, kind: input, shape index: {}]
  %s4 = inlined_call_operand.vmem [shape: f32[1,64], index: 4, kind: input, shape index: {}]
  %s5 = inlined_call_operand.vmem [shape: bf16[64,64], index: 5, kind: input, shape index: {}]
  %s6 = inlined_call_operand.vmem [shape: f32[1,64], index: 6, kind: input, shape index: {}]
  %s7 = inlined_call_operand.vmem [shape: bf16[64,128], index: 7, kind: input, shape index: {}]
  %s8 = inlined_call_operand.vmem [shape: f32[1,128], index: 8, kind: input, shape index: {}]
  %s9 = inlined_call_operand.vmem [shape: f32[256,128], index: 9, kind: output, shape index: {}]
  %s10 = sld [smem:[#allocation0]]
  $region46: #{mlp_forward.1} parent=0
    _
  %s12 = ssub.s32 1, %s10
  %s13 = scalar_select 0, %s12, %s10
  // Predicated region
  $region2: #{mlp_forward.1} parent=0 // pred_check
    _
  $region3: #{mlp_forward.1} parent=0 // pred_check_branch
    %15 = sbr.rel (0) target = $region5
  $region4: #{mlp_forward.1} parent=0 // pred_region
    _
  $region5: #{mlp_forward.1} parent=0 // pred_fallthru
    _
  // Predicated region
  $region6: #{mlp_forward.1} parent=0 // pred_check
    _
  $region7: #{mlp_forward.1} parent=0 // pred_check_branch
    %17 = sbr.rel (0) target = $region9
  $region8: #{mlp_forward.1} parent=0 // pred_region
    _
  $region9: #{mlp_forward.1} parent=0 // pred_fallthru
    _
  // Predicated region
  $region10: #{mlp_forward.1} parent=0 // pred_check
    _
  $region11: #{mlp_forward.1} parent=0 // pred_check_branch
    %19 = sbr.rel (0) target = $region13
  $region12: #{mlp_forward.1} parent=0 // pred_region
    _
  $region13: #{mlp_forward.1} parent=0 // pred_fallthru
    _
  // Predicated region
  $region14: #{mlp_forward.1} parent=0 // pred_check
    _
  $region15: #{mlp_forward.1} parent=0 // pred_check_branch
    %21 = sbr.rel (0) target = $region17
  $region16: #{mlp_forward.1} parent=0 // pred_region
    _
  $region17: #{mlp_forward.1} parent=0 // pred_fallthru
    _
  // Predicated region
  $region18: #{mlp_forward.1} parent=0 // pred_check
    _
  $region19: #{mlp_forward.1} parent=0 // pred_check_branch
    %23 = sbr.rel (0) target = $region21
  $region20: #{mlp_forward.1} parent=0 // pred_region
    _
  $region21: #{mlp_forward.1} parent=0 // pred_fallthru
    _
  // Predicated region
  $region22: #{mlp_forward.1} parent=0 // pred_check
    _
  $region23: #{mlp_forward.1} parent=0 // pred_check_branch
    %25 = sbr.rel (0) target = $region25
  $region24: #{mlp_forward.1} parent=0 // pred_region
    _
  $region25: #{mlp_forward.1} parent=0 // pred_fallthru
    _
  // Predicated region
  $region26: #{mlp_forward.1} parent=0 // pred_check
    _
  $region27: #{mlp_forward.1} parent=0 // pred_check_branch
    %27 = sbr.rel (0) target = $region29
  $region28: #{mlp_forward.1} parent=0 // pred_region
    _
  $region29: #{mlp_forward.1} parent=0 // pred_fallthru
    _
  // Predicated region
  $region30: #{mlp_forward.1} parent=0 // pred_check
    _
  $region31: #{mlp_forward.1} parent=0 // pred_check_branch
    %29 = sbr.rel (0) target = $region33
  $region32: #{mlp_forward.1} parent=0 // pred_region
    _
  $region33: #{mlp_forward.1} parent=0 // pred_fallthru
    _
  // Predicated region
  $region34: #{mlp_forward.1} parent=0 // pred_check
    _
  $region35: #{mlp_forward.1} parent=0 // pred_check_branch
    %31 = sbr.rel (0) target = $region37
  $region36: #{mlp_forward.1} parent=0 // pred_region
    _
  $region37: #{mlp_forward.1} parent=0 // pred_fallthru
    _
  %v33 = vld [vmem:[%s0] sm:$0xf]
  %v34 = vld [vmem:[%s0 + $0x4] sm:$0xf]
  %v35 = vld [vmem:[%s0 + $0x8] sm:$0xf]
  %v36 = vld [vmem:[%s0 + $0xc] sm:$0xf]
  %v37 = vld [vmem:[%s0 + $0x10] sm:$0xf]
  %v38 = vld [vmem:[%s0 + $0x14] sm:$0xf]
  %v39 = vld [vmem:[%s0 + $0x18] sm:$0xf]
  %v40 = vld [vmem:[%s0 + $0x1c] sm:$0xf]
  %v41 = vld [vmem:[%s0 + $0x20] sm:$0xf]
  %v42 = vld [vmem:[%s0 + $0x24] sm:$0xf]
  %v43 = vld [vmem:[%s0 + $0x28] sm:$0xf]
  %v44 = vld [vmem:[%s0 + $0x2c] sm:$0xf]
  %v45 = vld [vmem:[%s0 + $0x30] sm:$0xf]
  %v46 = vld [vmem:[%s0 + $0x34] sm:$0xf]
  %v47 = vld [vmem:[%s0 + $0x38] sm:$0xf]
  %v48 = vld [vmem:[%s0 + $0x3c] sm:$0xf]
  %v49 = vld [vmem:[%s0 + $0x40] sm:$0xf]
  %v50 = vld [vmem:[%s0 + $0x44] sm:$0xf]
  %v51 = vld [vmem:[%s0 + $0x48] sm:$0xf]
  %v52 = vld [vmem:[%s0 + $0x4c] sm:$0xf]
  %v53 = vld [vmem:[%s0 + $0x50] sm:$0xf]
  %v54 = vld [vmem:[%s0 + $0x54] sm:$0xf]
  %v55 = vld [vmem:[%s0 + $0x58] sm:$0xf]
  %v56 = vld [vmem:[%s0 + $0x5c] sm:$0xf]
  %v57 = vld [vmem:[%s0 + $0x60] sm:$0xf]
  %v58 = vld [vmem:[%s0 + $0x64] sm:$0xf]
  %v59 = vld [vmem:[%s0 + $0x68] sm:$0xf]
  %v60 = vld [vmem:[%s0 + $0x6c] sm:$0xf]
  %v61 = vld [vmem:[%s0 + $0x70] sm:$0xf]
  %v62 = vld [vmem:[%s0 + $0x74] sm:$0xf]
  %v63 = vld [vmem:[%s0 + $0x78] sm:$0xf]
  %v64 = vld [vmem:[%s0 + $0x7c] sm:$0xf]
  %v65 = vld [vmem:[%s1] sm:$0xf]
  %v66 = vld [vmem:[%s1 + $0x4] sm:$0xf]
  %v67 = vld [vmem:[%s1 + $0x8] sm:$0xf]
  %v68 = vld [vmem:[%s1 + $0xc] sm:$0xf]
  %v69 = vld [vmem:[%s2] sm:$0x1]
  %v71 = vlaneseq
  %v72 = vshrl.u32 %v71, 7
  %v73 = vsub.s32 0, %v72
  %v74 = vrot.slane %v69, %v73
  %v108 = vunpack.c.l.b16 %v33
  %v109 = vunpack.c.l.b16 %v34
  %v110 = vunpack.c.l.b16 %v35
  %v111 = vunpack.c.l.b16 %v36
  %v112 = vunpack.c.l.b16 %v37
  %v113 = vunpack.c.l.b16 %v38
  %v114 = vunpack.c.l.b16 %v39
  %v115 = vunpack.c.l.b16 %v40
  %v116 = vunpack.c.l.b16 %v41
  %v117 = vunpack.c.l.b16 %v42
  %v118 = vunpack.c.l.b16 %v43
  %v119 = vunpack.c.l.b16 %v44
  %v120 = vunpack.c.l.b16 %v45
  %v121 = vunpack.c.l.b16 %v46
  %v122 = vunpack.c.l.b16 %v47
  %v123 = vunpack.c.l.b16 %v48
  %v124 = vunpack.c.l.b16 %v49
  %v125 = vunpack.c.l.b16 %v50
  %v126 = vunpack.c.l.b16 %v51
  %v127 = vunpack.c.l.b16 %v52
  %v128 = vunpack.c.l.b16 %v53
  %v129 = vunpack.c.l.b16 %v54
  %v130 = vunpack.c.l.b16 %v55
  %v131 = vunpack.c.l.b16 %v56
  %v132 = vunpack.c.l.b16 %v57
  %v133 = vunpack.c.l.b16 %v58
  %v134 = vunpack.c.l.b16 %v59
  %v135 = vunpack.c.l.b16 %v60
  %v136 = vunpack.c.l.b16 %v61
  %v137 = vunpack.c.l.b16 %v62
  %v138 = vunpack.c.l.b16 %v63
  %v139 = vunpack.c.l.b16 %v64
  %v140 = vpack.c.b16 %v109, %v108
  %v141 = vpack.c.b16 %v111, %v110
  %v142 = vpack.c.b16 %v113, %v112
  %v143 = vpack.c.b16 %v115, %v114
  %v144 = vpack.c.b16 %v117, %v116
  %v145 = vpack.c.b16 %v119, %v118
  %v146 = vpack.c.b16 %v121, %v120
  %v147 = vpack.c.b16 %v123, %v122
  %v148 = vpack.c.b16 %v125, %v124
  %v149 = vpack.c.b16 %v127, %v126
  %v150 = vpack.c.b16 %v129, %v128
  %v151 = vpack.c.b16 %v131, %v130
  %v152 = vpack.c.b16 %v133, %v132
  %v153 = vpack.c.b16 %v135, %v134
  %v154 = vpack.c.b16 %v137, %v136
  %v155 = vpack.c.b16 %v139, %v138
  %v160 = vunpack.c.l.b16 %v65
  %v161 = vunpack.c.l.b16 %v66
  %v162 = vunpack.c.l.b16 %v67
  %v163 = vunpack.c.l.b16 %v68
  %v164 = vpack.c.b16 %v161, %v160
  %v165 = vpack.c.b16 %v163, %v162
  %vm168 = vcmask 261120
  %v170 = vsel %vm168, %v140, 0
  %v173 = vsel %vm168, %v141, 0
  %v176 = vsel %vm168, %v142, 0
  %v179 = vsel %vm168, %v143, 0
  %v182 = vsel %vm168, %v144, 0
  %v185 = vsel %vm168, %v145, 0
  %v188 = vsel %vm168, %v146, 0
  %v191 = vsel %vm168, %v147, 0
  %v194 = vsel %vm168, %v148, 0
  %v197 = vsel %vm168, %v149, 0
  %v200 = vsel %vm168, %v150, 0
  %v203 = vsel %vm168, %v151, 0
  %v206 = vsel %vm168, %v152, 0
  %v209 = vsel %vm168, %v153, 0
  %v212 = vsel %vm168, %v154, 0
  %v215 = vsel %vm168, %v155, 0
  %217 = vmatprep.subr.bf16.mxu0 0
  %218 = vmatpush1.bf16.msra.mxu0 %v164
  %219 = vmatprep.subr.bf16.mxu0 0
  %220 = vmatpush1.bf16.msra.mxu0 %v165
  %221 = vmatprep.subr.bf16.mxu0 0
  %222 = vmatpush1.bf16.msra.mxu0 0
  %223 = vmatprep.subr.bf16.mxu0 0
  %224 = vmatpush1.bf16.msra.mxu0 0
  %225 = vmatprep.subr.bf16.mxu0 0
  %226 = vmatpush1.bf16.msra.mxu0 0
  %227 = vmatprep.subr.bf16.mxu0 0
  %228 = vmatpush1.bf16.msra.mxu0 0
  %229 = vmatprep.subr.bf16.mxu0 0
  %230 = vmatpush1.bf16.msra.mxu0 0
  %231 = vmatprep.subr.bf16.mxu0 0
  %232 = vmatpush1.bf16.msra.mxu0 0
  %233 = vmatprep.subr.bf16.mxu0 0
  %234 = vmatpush1.bf16.msra.mxu0 0
  %235 = vmatprep.subr.bf16.mxu0 0
  %236 = vmatpush1.bf16.msra.mxu0 0
  %237 = vmatprep.subr.bf16.mxu0 0
  %238 = vmatpush1.bf16.msra.mxu0 0
  %239 = vmatprep.subr.bf16.mxu0 0
  %240 = vmatpush1.bf16.msra.mxu0 0
  %241 = vmatprep.subr.bf16.mxu0 0
  %242 = vmatpush1.bf16.msra.mxu0 0
  %243 = vmatprep.subr.bf16.mxu0 0
  %244 = vmatpush1.bf16.msra.mxu0 0
  %245 = vmatprep.subr.bf16.mxu0 0
  %246 = vmatpush1.bf16.msra.mxu0 0
  %247 = vmatprep.subr.bf16.mxu0 0
  %248 = vmatpush1.bf16.msra.mxu0 0
  %249 = vmatprep.mubr.bf16.mxu0 0
  %250 = vmatmul.mubr.bf16.gmra.mrb[0].mxu0 %v170
  %v251 = vpop.f32.mrb[0].mxu0
  %v252 = vadd.f32 %v74, %v251
  %v253 = vpop.f32.mrb[0].mxu0
  %v254 = vpop.f32.mrb[0].mxu0
  %v255 = vadd.f32 %v74, %v254
  %v256 = vpop.f32.mrb[0].mxu0
  %257 = vmatprep.mubr.bf16.mxu0 0
  %258 = vmatmul.mubr.bf16.gmra.mrb[0].mxu0 %v173
  %v259 = vpop.f32.mrb[0].mxu0
  %v260 = vadd.f32 %v74, %v259
  %v261 = vpop.f32.mrb[0].mxu0
  %v262 = vpop.f32.mrb[0].mxu0
  %v263 = vadd.f32 %v74, %v262
  %v264 = vpop.f32.mrb[0].mxu0
  %265 = vmatprep.mubr.bf16.mxu0 0
  %266 = vmatmul.mubr.bf16.gmra.mrb[0].mxu0 %v176
  %v267 = vpop.f32.mrb[0].mxu0
  %v268 = vadd.f32 %v74, %v267
  %v269 = vpop.f32.mrb[0].mxu0
  %v270 = vpop.f32.mrb[0].mxu0
  %v271 = vadd.f32 %v74, %v270
  %v272 = vpop.f32.mrb[0].mxu0
  %273 = vmatprep.mubr.bf16.mxu0 0
  %274 = vmatmul.mubr.bf16.gmra.mrb[0].mxu0 %v179
  %v275 = vpop.f32.mrb[0].mxu0
  %v276 = vadd.f32 %v74, %v275
  %v277 = vpop.f32.mrb[0].mxu0
  %v278 = vpop.f32.mrb[0].mxu0
  %v279 = vadd.f32 %v74, %v278
  %v280 = vpop.f32.mrb[0].mxu0
  %281 = vmatprep.mubr.bf16.mxu0 0
  %282 = vmatmul.mubr.bf16.gmra.mrb[0].mxu0 %v182
  %v283 = vpop.f32.mrb[0].mxu0
  %v284 = vadd.f32 %v74, %v283
  %v285 = vpop.f32.mrb[0].mxu0
  %v286 = vpop.f32.mrb[0].mxu0
  %v287 = vadd.f32 %v74, %v286
  %v288 = vpop.f32.mrb[0].mxu0
  %289 = vmatprep.mubr.bf16.mxu0 0
  %290 = vmatmul.mubr.bf16.gmra.mrb[0].mxu0 %v185
  %v291 = vpop.f32.mrb[0].mxu0
  %v292 = vadd.f32 %v74, %v291
  %v293 = vpop.f32.mrb[0].mxu0
  %v294 = vpop.f32.mrb[0].mxu0
  %v295 = vadd.f32 %v74, %v294
  %v296 = vpop.f32.mrb[0].mxu0
  %297 = vmatprep.mubr.bf16.mxu0 0
  %298 = vmatmul.mubr.bf16.gmra.mrb[0].mxu0 %v188
  %v299 = vpop.f32.mrb[0].mxu0
  %v300 = vadd.f32 %v74, %v299
  %v301 = vpop.f32.mrb[0].mxu0
  %v302 = vpop.f32.mrb[0].mxu0
  %v303 = vadd.f32 %v74, %v302
  %v304 = vpop.f32.mrb[0].mxu0
  %305 = vmatprep.mubr.bf16.mxu0 0
  %306 = vmatmul.mubr.bf16.gmra.mrb[0].mxu0 %v191
  %v307 = vpop.f32.mrb[0].mxu0
  %v308 = vadd.f32 %v74, %v307
  %v309 = vpop.f32.mrb[0].mxu0
  %v310 = vpop.f32.mrb[0].mxu0
  %v311 = vadd.f32 %v74, %v310
  %v312 = vpop.f32.mrb[0].mxu0
  %313 = vmatprep.mubr.bf16.mxu0 0
  %314 = vmatmul.mubr.bf16.gmra.mrb[0].mxu0 %v194
  %v315 = vpop.f32.mrb[0].mxu0
  %v316 = vadd.f32 %v74, %v315
  %v317 = vpop.f32.mrb[0].mxu0
  %v318 = vpop.f32.mrb[0].mxu0
  %v319 = vadd.f32 %v74, %v318
  %v320 = vpop.f32.mrb[0].mxu0
  %321 = vmatprep.mubr.bf16.mxu0 0
  %322 = vmatmul.mubr.bf16.gmra.mrb[0].mxu0 %v197
  %v323 = vpop.f32.mrb[0].mxu0
  %v324 = vadd.f32 %v74, %v323
  %v325 = vpop.f32.mrb[0].mxu0
  %v326 = vpop.f32.mrb[0].mxu0
  %v327 = vadd.f32 %v74, %v326
  %v328 = vpop.f32.mrb[0].mxu0
  %329 = vmatprep.mubr.bf16.mxu0 0
  %330 = vmatmul.mubr.bf16.gmra.mrb[0].mxu0 %v200
  %v331 = vpop.f32.mrb[0].mxu0
  %v332 = vadd.f32 %v74, %v331
  %v333 = vpop.f32.mrb[0].mxu0
  %v334 = vpop.f32.mrb[0].mxu0
  %v335 = vadd.f32 %v74, %v334
  %v336 = vpop.f32.mrb[0].mxu0
  %337 = vmatprep.mubr.bf16.mxu0 0
  %338 = vmatmul.mubr.bf16.gmra.mrb[0].mxu0 %v203
  %v339 = vpop.f32.mrb[0].mxu0
  %v340 = vadd.f32 %v74, %v339
  %v341 = vpop.f32.mrb[0].mxu0
  %v342 = vpop.f32.mrb[0].mxu0
  %v343 = vadd.f32 %v74, %v342
  %v344 = vpop.f32.mrb[0].mxu0
  %345 = vmatprep.mubr.bf16.mxu0 0
  %346 = vmatmul.mubr.bf16.gmra.mrb[0].mxu0 %v206
  %v347 = vpop.f32.mrb[0].mxu0
  %v348 = vadd.f32 %v74, %v347
  %v349 = vpop.f32.mrb[0].mxu0
  %v350 = vpop.f32.mrb[0].mxu0
  %v351 = vadd.f32 %v74, %v350
  %v352 = vpop.f32.mrb[0].mxu0
  %353 = vmatprep.mubr.bf16.mxu0 0
  %354 = vmatmul.mubr.bf16.gmra.mrb[0].mxu0 %v209
  %v355 = vpop.f32.mrb[0].mxu0
  %v356 = vadd.f32 %v74, %v355
  %v357 = vpop.f32.mrb[0].mxu0
  %v358 = vpop.f32.mrb[0].mxu0
  %v359 = vadd.f32 %v74, %v358
  %v360 = vpop.f32.mrb[0].mxu0
  %361 = vmatprep.mubr.bf16.mxu0 0
  %362 = vmatmul.mubr.bf16.gmra.mrb[0].mxu0 %v212
  %v363 = vpop.f32.mrb[0].mxu0
  %v364 = vadd.f32 %v74, %v363
  %v365 = vpop.f32.mrb[0].mxu0
  %v366 = vpop.f32.mrb[0].mxu0
  %v367 = vadd.f32 %v74, %v366
  %v368 = vpop.f32.mrb[0].mxu0
  %369 = vmatprep.mubr.bf16.mxu0 0
  %370 = vmatmul.mubr.bf16.gmra.mrb[0].mxu0 %v215
  %v371 = vpop.f32.mrb[0].mxu0
  %v372 = vadd.f32 %v74, %v371
  %v373 = vpop.f32.mrb[0].mxu0
  %v374 = vpop.f32.mrb[0].mxu0
  %v375 = vadd.f32 %v74, %v374
  %v376 = vpop.f32.mrb[0].mxu0
  %377 = vdwg.mxu0
  %v378 = vmax.f32 %v252, 0.0
  %v379 = vmax.f32 %v255, 0.0
  %v380 = vmax.f32 %v260, 0.0
  %v381 = vmax.f32 %v263, 0.0
  %v382 = vmax.f32 %v268, 0.0
  %v383 = vmax.f32 %v271, 0.0
  %v384 = vmax.f32 %v276, 0.0
  %v385 = vmax.f32 %v279, 0.0
  %v386 = vmax.f32 %v284, 0.0
  %v387 = vmax.f32 %v287, 0.0
  %v388 = vmax.f32 %v292, 0.0
  %v389 = vmax.f32 %v295, 0.0
  %v390 = vmax.f32 %v300, 0.0
  %v391 = vmax.f32 %v303, 0.0
  %v392 = vmax.f32 %v308, 0.0
  %v393 = vmax.f32 %v311, 0.0
  %v394 = vmax.f32 %v316, 0.0
  %v395 = vmax.f32 %v319, 0.0
  %v396 = vmax.f32 %v324, 0.0
  %v397 = vmax.f32 %v327, 0.0
  %v398 = vmax.f32 %v332, 0.0
  %v399 = vmax.f32 %v335, 0.0
  %v400 = vmax.f32 %v340, 0.0
  %v401 = vmax.f32 %v343, 0.0
  %v402 = vmax.f32 %v348, 0.0
  %v403 = vmax.f32 %v351, 0.0
  %v404 = vmax.f32 %v356, 0.0
  %v405 = vmax.f32 %v359, 0.0
  %v406 = vmax.f32 %v364, 0.0
  %v407 = vmax.f32 %v367, 0.0
  %v408 = vmax.f32 %v372, 0.0
  %v409 = vmax.f32 %v375, 0.0
  %v410 = vpack.c.bf16 %v379, %v378
  %v411 = vpack.c.bf16 %v381, %v380
  %v412 = vpack.c.bf16 %v383, %v382
  %v413 = vpack.c.bf16 %v385, %v384
  %v414 = vpack.c.bf16 %v387, %v386
  %v415 = vpack.c.bf16 %v389, %v388
  %v416 = vpack.c.bf16 %v391, %v390
  %v417 = vpack.c.bf16 %v393, %v392
  %v418 = vpack.c.bf16 %v395, %v394
  %v419 = vpack.c.bf16 %v397, %v396
  %v420 = vpack.c.bf16 %v399, %v398
  %v421 = vpack.c.bf16 %v401, %v400
  %v422 = vpack.c.bf16 %v403, %v402
  %v423 = vpack.c.bf16 %v405, %v404
  %v424 = vpack.c.bf16 %v407, %v406
  %v425 = vpack.c.bf16 %v409, %v408
  %v426 = vld [vmem:[%s3] sm:$0xf]
  %v427 = vld [vmem:[%s3 + $0x4] sm:$0xf]
  %v428 = vld [vmem:[%s3 + $0x8] sm:$0xf]
  %v429 = vld [vmem:[%s3 + $0xc] sm:$0xf]
  %v430 = vld [vmem:[%s3 + $0x10] sm:$0xf]
  %v431 = vld [vmem:[%s3 + $0x14] sm:$0xf]
  %v432 = vld [vmem:[%s3 + $0x18] sm:$0xf]
  %v433 = vld [vmem:[%s3 + $0x1c] sm:$0xf]
  %v434 = vld [vmem:[%s4] sm:$0x1]
  %v436 = vlaneseq
  %v437 = vshrl.u32 %v436, 7
  %v438 = vsub.s32 0, %v437
  %v439 = vrot.slane %v434, %v438
  %v449 = vunpack.c.l.b16 %v426
  %v450 = vunpack.c.l.b16 %v427
  %v451 = vunpack.c.l.b16 %v428
  %v452 = vunpack.c.l.b16 %v429
  %v453 = vunpack.c.l.b16 %v430
  %v454 = vunpack.c.l.b16 %v431
  %v455 = vunpack.c.l.b16 %v432
  %v456 = vunpack.c.l.b16 %v433
  %v457 = vpack.c.b16 %v450, %v449
  %v458 = vpack.c.b16 %v452, %v451
  %v459 = vpack.c.b16 %v454, %v453
  %v460 = vpack.c.b16 %v456, %v455
  %vm465 = vcmask 523264
  %v467 = vsel %vm465, %v410, 0
  %v470 = vsel %vm465, %v411, 0
  %v473 = vsel %vm465, %v412, 0
  %v476 = vsel %vm465, %v413, 0
  %v479 = vsel %vm465, %v414, 0
  %v482 = vsel %vm465, %v415, 0
  %v485 = vsel %vm465, %v416, 0
  %v488 = vsel %vm465, %v417, 0
  %v491 = vsel %vm465, %v418, 0
  %v494 = vsel %vm465, %v419, 0
  %v497 = vsel %vm465, %v420, 0
  %v500 = vsel %vm465, %v421, 0
  %v503 = vsel %vm465, %v422, 0
  %v506 = vsel %vm465, %v423, 0
  %v509 = vsel %vm465, %v424, 0
  %v512 = vsel %vm465, %v425, 0
  %514 = vmatprep.subr.bf16.mxu0 0
  %515 = vmatpush1.bf16.msra.mxu0 %v457
  %516 = vmatprep.subr.bf16.mxu0 0
  %517 = vmatpush1.bf16.msra.mxu0 %v458
  %518 = vmatprep.subr.bf16.mxu0 0
  %519 = vmatpush1.bf16.msra.mxu0 %v459
  %520 = vmatprep.subr.bf16.mxu0 0
  %521 = vmatpush1.bf16.msra.mxu0 %v460
  %522 = vmatprep.subr.bf16.mxu0 0
  %523 = vmatpush1.bf16.msra.mxu0 0
  %524 = vmatprep.subr.bf16.mxu0 0
  %525 = vmatpush1.bf16.msra.mxu0 0
  %526 = vmatprep.subr.bf16.mxu0 0
  %527 = vmatpush1.bf16.msra.mxu0 0
  %528 = vmatprep.subr.bf16.mxu0 0
  %529 = vmatpush1.bf16.msra.mxu0 0
  %530 = vmatprep.subr.bf16.mxu0 0
  %531 = vmatpush1.bf16.msra.mxu0 0
  %532 = vmatprep.subr.bf16.mxu0 0
  %533 = vmatpush1.bf16.msra.mxu0 0
  %534 = vmatprep.subr.bf16.mxu0 0
  %535 = vmatpush1.bf16.msra.mxu0 0
  %536 = vmatprep.subr.bf16.mxu0 0
  %537 = vmatpush1.bf16.msra.mxu0 0
  %538 = vmatprep.subr.bf16.mxu0 0
  %539 = vmatpush1.bf16.msra.mxu0 0
  %540 = vmatprep.subr.bf16.mxu0 0
  %541 = vmatpush1.bf16.msra.mxu0 0
  %542 = vmatprep.subr.bf16.mxu0 0
  %543 = vmatpush1.bf16.msra.mxu0 0
  %544 = vmatprep.subr.bf16.mxu0 0
  %545 = vmatpush1.bf16.msra.mxu0 0
  %546 = vmatprep.mubr.bf16.mxu0 0
  %547 = vmatmul.mubr.bf16.gmra.mrb[0].mxu0 %v467
  %v548 = vpop.f32.mrb[0].mxu0
  %v549 = vadd.f32 %v439, %v548
  %v550 = vpop.f32.mrb[0].mxu0
  %v551 = vpop.f32.mrb[0].mxu0
  %v552 = vadd.f32 %v439, %v551
  %v553 = vpop.f32.mrb[0].mxu0
  %554 = vmatprep.mubr.bf16.mxu0 0
  %555 = vmatmul.mubr.bf16.gmra.mrb[0].mxu0 %v470
  %v556 = vpop.f32.mrb[0].mxu0
  %v557 = vadd.f32 %v439, %v556
  %v558 = vpop.f32.mrb[0].mxu0
  %v559 = vpop.f32.mrb[0].mxu0
  %v560 = vadd.f32 %v439, %v559
  %v561 = vpop.f32.mrb[0].mxu0
  %562 = vmatprep.mubr.bf16.mxu0 0
  %563 = vmatmul.mubr.bf16.gmra.mrb[0].mxu0 %v473
  %v564 = vpop.f32.mrb[0].mxu0
  %v565 = vadd.f32 %v439, %v564
  %v566 = vpop.f32.mrb[0].mxu0
  %v567 = vpop.f32.mrb[0].mxu0
  %v568 = vadd.f32 %v439, %v567
  %v569 = vpop.f32.mrb[0].mxu0
  %570 = vmatprep.mubr.bf16.mxu0 0
  %571 = vmatmul.mubr.bf16.gmra.mrb[0].mxu0 %v476
  %v572 = vpop.f32.mrb[0].mxu0
  %v573 = vadd.f32 %v439, %v572
  %v574 = vpop.f32.mrb[0].mxu0
  %v575 = vpop.f32.mrb[0].mxu0
  %v576 = vadd.f32 %v439, %v575
  %v577 = vpop.f32.mrb[0].mxu0
  %578 = vmatprep.mubr.bf16.mxu0 0
  %579 = vmatmul.mubr.bf16.gmra.mrb[0].mxu0 %v479
  %v580 = vpop.f32.mrb[0].mxu0
  %v581 = vadd.f32 %v439, %v580
  %v582 = vpop.f32.mrb[0].mxu0
  %v583 = vpop.f32.mrb[0].mxu0
  %v584 = vadd.f32 %v439, %v583
  %v585 = vpop.f32.mrb[0].mxu0
  %586 = vmatprep.mubr.bf16.mxu0 0
  %587 = vmatmul.mubr.bf16.gmra.mrb[0].mxu0 %v482
  %v588 = vpop.f32.mrb[0].mxu0
  %v589 = vadd.f32 %v439, %v588
  %v590 = vpop.f32.mrb[0].mxu0
  %v591 = vpop.f32.mrb[0].mxu0
  %v592 = vadd.f32 %v439, %v591
  %v593 = vpop.f32.mrb[0].mxu0
  %594 = vmatprep.mubr.bf16.mxu0 0
  %595 = vmatmul.mubr.bf16.gmra.mrb[0].mxu0 %v485
  %v596 = vpop.f32.mrb[0].mxu0
  %v597 = vadd.f32 %v439, %v596
  %v598 = vpop.f32.mrb[0].mxu0
  %v599 = vpop.f32.mrb[0].mxu0
  %v600 = vadd.f32 %v439, %v599
  %v601 = vpop.f32.mrb[0].mxu0
  %602 = vmatprep.mubr.bf16.mxu0 0
  %603 = vmatmul.mubr.bf16.gmra.mrb[0].mxu0 %v488
  %v604 = vpop.f32.mrb[0].mxu0
  %v605 = vadd.f32 %v439, %v604
  %v606 = vpop.f32.mrb[0].mxu0
  %v607 = vpop.f32.mrb[0].mxu0
  %v608 = vadd.f32 %v439, %v607
  %v609 = vpop.f32.mrb[0].mxu0
  %610 = vmatprep.mubr.bf16.mxu0 0
  %611 = vmatmul.mubr.bf16.gmra.mrb[0].mxu0 %v491
  %v612 = vpop.f32.mrb[0].mxu0
  %v613 = vadd.f32 %v439, %v612
  %v614 = vpop.f32.mrb[0].mxu0
  %v615 = vpop.f32.mrb[0].mxu0
  %v616 = vadd.f32 %v439, %v615
  %v617 = vpop.f32.mrb[0].mxu0
  %618 = vmatprep.mubr.bf16.mxu0 0
  %619 = vmatmul.mubr.bf16.gmra.mrb[0].mxu0 %v494
  %v620 = vpop.f32.mrb[0].mxu0
  %v621 = vadd.f32 %v439, %v620
  %v622 = vpop.f32.mrb[0].mxu0
  %v623 = vpop.f32.mrb[0].mxu0
  %v624 = vadd.f32 %v439, %v623
  %v625 = vpop.f32.mrb[0].mxu0
  %626 = vmatprep.mubr.bf16.mxu0 0
  %627 = vmatmul.mubr.bf16.gmra.mrb[0].mxu0 %v497
  %v628 = vpop.f32.mrb[0].mxu0
  %v629 = vadd.f32 %v439, %v628
  %v630 = vpop.f32.mrb[0].mxu0
  %v631 = vpop.f32.mrb[0].mxu0
  %v632 = vadd.f32 %v439, %v631
  %v633 = vpop.f32.mrb[0].mxu0
  %634 = vmatprep.mubr.bf16.mxu0 0
  %635 = vmatmul.mubr.bf16.gmra.mrb[0].mxu0 %v500
  %v636 = vpop.f32.mrb[0].mxu0
  %v637 = vadd.f32 %v439, %v636
  %v638 = vpop.f32.mrb[0].mxu0
  %v639 = vpop.f32.mrb[0].mxu0
  %v640 = vadd.f32 %v439, %v639
  %v641 = vpop.f32.mrb[0].mxu0
  %642 = vmatprep.mubr.bf16.mxu0 0
  %643 = vmatmul.mubr.bf16.gmra.mrb[0].mxu0 %v503
  %v644 = vpop.f32.mrb[0].mxu0
  %v645 = vadd.f32 %v439, %v644
  %v646 = vpop.f32.mrb[0].mxu0
  %v647 = vpop.f32.mrb[0].mxu0
  %v648 = vadd.f32 %v439, %v647
  %v649 = vpop.f32.mrb[0].mxu0
  %650 = vmatprep.mubr.bf16.mxu0 0
  %651 = vmatmul.mubr.bf16.gmra.mrb[0].mxu0 %v506
  %v652 = vpop.f32.mrb[0].mxu0
  %v653 = vadd.f32 %v439, %v652
  %v654 = vpop.f32.mrb[0].mxu0
  %v655 = vpop.f32.mrb[0].mxu0
  %v656 = vadd.f32 %v439, %v655
  %v657 = vpop.f32.mrb[0].mxu0
  %658 = vmatprep.mubr.bf16.mxu0 0
  %659 = vmatmul.mubr.bf16.gmra.mrb[0].mxu0 %v509
  %v660 = vpop.f32.mrb[0].mxu0
  %v661 = vadd.f32 %v439, %v660
  %v662 = vpop.f32.mrb[0].mxu0
  %v663 = vpop.f32.mrb[0].mxu0
  %v664 = vadd.f32 %v439, %v663
  %v665 = vpop.f32.mrb[0].mxu0
  %666 = vmatprep.mubr.bf16.mxu0 0
  %667 = vmatmul.mubr.bf16.gmra.mrb[0].mxu0 %v512
  %v668 = vpop.f32.mrb[0].mxu0
  %v669 = vadd.f32 %v439, %v668
  %v670 = vpop.f32.mrb[0].mxu0
  %v671 = vpop.f32.mrb[0].mxu0
  %v672 = vadd.f32 %v439, %v671
  %v673 = vpop.f32.mrb[0].mxu0
  %674 = vdwg.mxu0
  %v675 = vmax.f32 %v549, 0.0
  %v676 = vmax.f32 %v552, 0.0
  %v677 = vmax.f32 %v557, 0.0
  %v678 = vmax.f32 %v560, 0.0
  %v679 = vmax.f32 %v565, 0.0
  %v680 = vmax.f32 %v568, 0.0
  %v681 = vmax.f32 %v573, 0.0
  %v682 = vmax.f32 %v576, 0.0
  %v683 = vmax.f32 %v581, 0.0
  %v684 = vmax.f32 %v584, 0.0
  %v685 = vmax.f32 %v589, 0.0
  %v686 = vmax.f32 %v592, 0.0
  %v687 = vmax.f32 %v597, 0.0
  %v688 = vmax.f32 %v600, 0.0
  %v689 = vmax.f32 %v605, 0.0
  %v690 = vmax.f32 %v608, 0.0
  %v691 = vmax.f32 %v613, 0.0
  %v692 = vmax.f32 %v616, 0.0
  %v693 = vmax.f32 %v621, 0.0
  %v694 = vmax.f32 %v624, 0.0
  %v695 = vmax.f32 %v629, 0.0
  %v696 = vmax.f32 %v632, 0.0
  %v697 = vmax.f32 %v637, 0.0
  %v698 = vmax.f32 %v640, 0.0
  %v699 = vmax.f32 %v645, 0.0
  %v700 = vmax.f32 %v648, 0.0
  %v701 = vmax.f32 %v653, 0.0
  %v702 = vmax.f32 %v656, 0.0
  %v703 = vmax.f32 %v661, 0.0
  %v704 = vmax.f32 %v664, 0.0
  %v705 = vmax.f32 %v669, 0.0
  %v706 = vmax.f32 %v672, 0.0
  %v707 = vpack.c.bf16 %v676, %v675
  %v708 = vpack.c.bf16 %v678, %v677
  %v709 = vpack.c.bf16 %v680, %v679
  %v710 = vpack.c.bf16 %v682, %v681
  %v711 = vpack.c.bf16 %v684, %v683
  %v712 = vpack.c.bf16 %v686, %v685
  %v713 = vpack.c.bf16 %v688, %v687
  %v714 = vpack.c.bf16 %v690, %v689
  %v715 = vpack.c.bf16 %v692, %v691
  %v716 = vpack.c.bf16 %v694, %v693
  %v717 = vpack.c.bf16 %v696, %v695
  %v718 = vpack.c.bf16 %v698, %v697
  %v719 = vpack.c.bf16 %v700, %v699
  %v720 = vpack.c.bf16 %v702, %v701
  %v721 = vpack.c.bf16 %v704, %v703
  %v722 = vpack.c.bf16 %v706, %v705
  %v723 = vld [vmem:[%s5] sm:$0xf]
  %v724 = vld [vmem:[%s5 + $0x4] sm:$0xf]
  %v725 = vld [vmem:[%s5 + $0x8] sm:$0xf]
  %v726 = vld [vmem:[%s5 + $0xc] sm:$0xf]
  %v727 = vld [vmem:[%s5 + $0x10] sm:$0xf]
  %v728 = vld [vmem:[%s5 + $0x14] sm:$0xf]
  %v729 = vld [vmem:[%s5 + $0x18] sm:$0xf]
  %v730 = vld [vmem:[%s5 + $0x1c] sm:$0xf]
  %v731 = vld [vmem:[%s6] sm:$0x1]
  %v733 = vlaneseq
  %v734 = vshrl.u32 %v733, 7
  %v735 = vsub.s32 0, %v734
  %v736 = vrot.slane %v731, %v735
  %v746 = vunpack.c.l.b16 %v723
  %v747 = vunpack.c.l.b16 %v724
  %v748 = vunpack.c.l.b16 %v725
  %v749 = vunpack.c.l.b16 %v726
  %v750 = vunpack.c.l.b16 %v727
  %v751 = vunpack.c.l.b16 %v728
  %v752 = vunpack.c.l.b16 %v729
  %v753 = vunpack.c.l.b16 %v730
  %v754 = vpack.c.b16 %v747, %v746
  %v755 = vpack.c.b16 %v749, %v748
  %v756 = vpack.c.b16 %v751, %v750
  %v757 = vpack.c.b16 %v753, %v752
  %v763 = vsel %vm465, %v707, 0
  %v766 = vsel %vm465, %v708, 0
  %v769 = vsel %vm465, %v709, 0
  %v772 = vsel %vm465, %v710, 0
  %v775 = vsel %vm465, %v711, 0
  %v778 = vsel %vm465, %v712, 0
  %v781 = vsel %vm465, %v713, 0
  %v784 = vsel %vm465, %v714, 0
  %v787 = vsel %vm465, %v715, 0
  %v790 = vsel %vm465, %v716, 0
  %v793 = vsel %vm465, %v717, 0
  %v796 = vsel %vm465, %v718, 0
  %v799 = vsel %vm465, %v719, 0
  %v802 = vsel %vm465, %v720, 0
  %v805 = vsel %vm465, %v721, 0
  %v808 = vsel %vm465, %v722, 0
  %810 = vmatprep.subr.bf16.mxu0 0
  %811 = vmatpush1.bf16.msra.mxu0 %v754
  %812 = vmatprep.subr.bf16.mxu0 0
  %813 = vmatpush1.bf16.msra.mxu0 %v755
  %814 = vmatprep.subr.bf16.mxu0 0
  %815 = vmatpush1.bf16.msra.mxu0 %v756
  %816 = vmatprep.subr.bf16.mxu0 0
  %817 = vmatpush1.bf16.msra.mxu0 %v757
  %818 = vmatprep.subr.bf16.mxu0 0
  %819 = vmatpush1.bf16.msra.mxu0 0
  %820 = vmatprep.subr.bf16.mxu0 0
  %821 = vmatpush1.bf16.msra.mxu0 0
  %822 = vmatprep.subr.bf16.mxu0 0
  %823 = vmatpush1.bf16.msra.mxu0 0
  %824 = vmatprep.subr.bf16.mxu0 0
  %825 = vmatpush1.bf16.msra.mxu0 0
  %826 = vmatprep.subr.bf16.mxu0 0
  %827 = vmatpush1.bf16.msra.mxu0 0
  %828 = vmatprep.subr.bf16.mxu0 0
  %829 = vmatpush1.bf16.msra.mxu0 0
  %830 = vmatprep.subr.bf16.mxu0 0
  %831 = vmatpush1.bf16.msra.mxu0 0
  %832 = vmatprep.subr.bf16.mxu0 0
  %833 = vmatpush1.bf16.msra.mxu0 0
  %834 = vmatprep.subr.bf16.mxu0 0
  %835 = vmatpush1.bf16.msra.mxu0 0
  %836 = vmatprep.subr.bf16.mxu0 0
  %837 = vmatpush1.bf16.msra.mxu0 0
  %838 = vmatprep.subr.bf16.mxu0 0
  %839 = vmatpush1.bf16.msra.mxu0 0
  %840 = vmatprep.subr.bf16.mxu0 0
  %841 = vmatpush1.bf16.msra.mxu0 0
  %842 = vmatprep.mubr.bf16.mxu0 0
  %843 = vmatmul.mubr.bf16.gmra.mrb[0].mxu0 %v763
  %v844 = vpop.f32.mrb[0].mxu0
  %v845 = vadd.f32 %v736, %v844
  %v846 = vpop.f32.mrb[0].mxu0
  %v847 = vpop.f32.mrb[0].mxu0
  %v848 = vadd.f32 %v736, %v847
  %v849 = vpop.f32.mrb[0].mxu0
  %850 = vmatprep.mubr.bf16.mxu0 0
  %851 = vmatmul.mubr.bf16.gmra.mrb[0].mxu0 %v766
  %v852 = vpop.f32.mrb[0].mxu0
  %v853 = vadd.f32 %v736, %v852
  %v854 = vpop.f32.mrb[0].mxu0
  %v855 = vpop.f32.mrb[0].mxu0
  %v856 = vadd.f32 %v736, %v855
  %v857 = vpop.f32.mrb[0].mxu0
  %858 = vmatprep.mubr.bf16.mxu0 0
  %859 = vmatmul.mubr.bf16.gmra.mrb[0].mxu0 %v769
  %v860 = vpop.f32.mrb[0].mxu0
  %v861 = vadd.f32 %v736, %v860
  %v862 = vpop.f32.mrb[0].mxu0
  %v863 = vpop.f32.mrb[0].mxu0
  %v864 = vadd.f32 %v736, %v863
  %v865 = vpop.f32.mrb[0].mxu0
  %866 = vmatprep.mubr.bf16.mxu0 0
  %867 = vmatmul.mubr.bf16.gmra.mrb[0].mxu0 %v772
  %v868 = vpop.f32.mrb[0].mxu0
  %v869 = vadd.f32 %v736, %v868
  %v870 = vpop.f32.mrb[0].mxu0
  %v871 = vpop.f32.mrb[0].mxu0
  %v872 = vadd.f32 %v736, %v871
  %v873 = vpop.f32.mrb[0].mxu0
  %874 = vmatprep.mubr.bf16.mxu0 0
  %875 = vmatmul.mubr.bf16.gmra.mrb[0].mxu0 %v775
  %v876 = vpop.f32.mrb[0].mxu0
  %v877 = vadd.f32 %v736, %v876
  %v878 = vpop.f32.mrb[0].mxu0
  %v879 = vpop.f32.mrb[0].mxu0
  %v880 = vadd.f32 %v736, %v879
  %v881 = vpop.f32.mrb[0].mxu0
  %882 = vmatprep.mubr.bf16.mxu0 0
  %883 = vmatmul.mubr.bf16.gmra.mrb[0].mxu0 %v778
  %v884 = vpop.f32.mrb[0].mxu0
  %v885 = vadd.f32 %v736, %v884
  %v886 = vpop.f32.mrb[0].mxu0
  %v887 = vpop.f32.mrb[0].mxu0
  %v888 = vadd.f32 %v736, %v887
  %v889 = vpop.f32.mrb[0].mxu0
  %890 = vmatprep.mubr.bf16.mxu0 0
  %891 = vmatmul.mubr.bf16.gmra.mrb[0].mxu0 %v781
  %v892 = vpop.f32.mrb[0].mxu0
  %v893 = vadd.f32 %v736, %v892
  %v894 = vpop.f32.mrb[0].mxu0
  %v895 = vpop.f32.mrb[0].mxu0
  %v896 = vadd.f32 %v736, %v895
  %v897 = vpop.f32.mrb[0].mxu0
  %898 = vmatprep.mubr.bf16.mxu0 0
  %899 = vmatmul.mubr.bf16.gmra.mrb[0].mxu0 %v784
  %v900 = vpop.f32.mrb[0].mxu0
  %v901 = vadd.f32 %v736, %v900
  %v902 = vpop.f32.mrb[0].mxu0
  %v903 = vpop.f32.mrb[0].mxu0
  %v904 = vadd.f32 %v736, %v903
  %v905 = vpop.f32.mrb[0].mxu0
  %906 = vmatprep.mubr.bf16.mxu0 0
  %907 = vmatmul.mubr.bf16.gmra.mrb[0].mxu0 %v787
  %v908 = vpop.f32.mrb[0].mxu0
  %v909 = vadd.f32 %v736, %v908
  %v910 = vpop.f32.mrb[0].mxu0
  %v911 = vpop.f32.mrb[0].mxu0
  %v912 = vadd.f32 %v736, %v911
  %v913 = vpop.f32.mrb[0].mxu0
  %914 = vmatprep.mubr.bf16.mxu0 0
  %915 = vmatmul.mubr.bf16.gmra.mrb[0].mxu0 %v790
  %v916 = vpop.f32.mrb[0].mxu0
  %v917 = vadd.f32 %v736, %v916
  %v918 = vpop.f32.mrb[0].mxu0
  %v919 = vpop.f32.mrb[0].mxu0
  %v920 = vadd.f32 %v736, %v919
  %v921 = vpop.f32.mrb[0].mxu0
  %922 = vmatprep.mubr.bf16.mxu0 0
  %923 = vmatmul.mubr.bf16.gmra.mrb[0].mxu0 %v793
  %v924 = vpop.f32.mrb[0].mxu0
  %v925 = vadd.f32 %v736, %v924
  %v926 = vpop.f32.mrb[0].mxu0
  %v927 = vpop.f32.mrb[0].mxu0
  %v928 = vadd.f32 %v736, %v927
  %v929 = vpop.f32.mrb[0].mxu0
  %930 = vmatprep.mubr.bf16.mxu0 0
  %931 = vmatmul.mubr.bf16.gmra.mrb[0].mxu0 %v796
  %v932 = vpop.f32.mrb[0].mxu0
  %v933 = vadd.f32 %v736, %v932
  %v934 = vpop.f32.mrb[0].mxu0
  %v935 = vpop.f32.mrb[0].mxu0
  %v936 = vadd.f32 %v736, %v935
  %v937 = vpop.f32.mrb[0].mxu0
  %938 = vmatprep.mubr.bf16.mxu0 0
  %939 = vmatmul.mubr.bf16.gmra.mrb[0].mxu0 %v799
  %v940 = vpop.f32.mrb[0].mxu0
  %v941 = vadd.f32 %v736, %v940
  %v942 = vpop.f32.mrb[0].mxu0
  %v943 = vpop.f32.mrb[0].mxu0
  %v944 = vadd.f32 %v736, %v943
  %v945 = vpop.f32.mrb[0].mxu0
  %946 = vmatprep.mubr.bf16.mxu0 0
  %947 = vmatmul.mubr.bf16.gmra.mrb[0].mxu0 %v802
  %v948 = vpop.f32.mrb[0].mxu0
  %v949 = vadd.f32 %v736, %v948
  %v950 = vpop.f32.mrb[0].mxu0
  %v951 = vpop.f32.mrb[0].mxu0
  %v952 = vadd.f32 %v736, %v951
  %v953 = vpop.f32.mrb[0].mxu0
  %954 = vmatprep.mubr.bf16.mxu0 0
  %955 = vmatmul.mubr.bf16.gmra.mrb[0].mxu0 %v805
  %v956 = vpop.f32.mrb[0].mxu0
  %v957 = vadd.f32 %v736, %v956
  %v958 = vpop.f32.mrb[0].mxu0
  %v959 = vpop.f32.mrb[0].mxu0
  %v960 = vadd.f32 %v736, %v959
  %v961 = vpop.f32.mrb[0].mxu0
  %962 = vmatprep.mubr.bf16.mxu0 0
  %963 = vmatmul.mubr.bf16.gmra.mrb[0].mxu0 %v808
  %v964 = vpop.f32.mrb[0].mxu0
  %v965 = vadd.f32 %v736, %v964
  %v966 = vpop.f32.mrb[0].mxu0
  %v967 = vpop.f32.mrb[0].mxu0
  %v968 = vadd.f32 %v736, %v967
  %v969 = vpop.f32.mrb[0].mxu0
  %970 = vdwg.mxu0
  %v971 = vmax.f32 %v845, 0.0
  %v972 = vmax.f32 %v848, 0.0
  %v973 = vmax.f32 %v853, 0.0
  %v974 = vmax.f32 %v856, 0.0
  %v975 = vmax.f32 %v861, 0.0
  %v976 = vmax.f32 %v864, 0.0
  %v977 = vmax.f32 %v869, 0.0
  %v978 = vmax.f32 %v872, 0.0
  %v979 = vmax.f32 %v877, 0.0
  %v980 = vmax.f32 %v880, 0.0
  %v981 = vmax.f32 %v885, 0.0
  %v982 = vmax.f32 %v888, 0.0
  %v983 = vmax.f32 %v893, 0.0
  %v984 = vmax.f32 %v896, 0.0
  %v985 = vmax.f32 %v901, 0.0
  %v986 = vmax.f32 %v904, 0.0
  %v987 = vmax.f32 %v909, 0.0
  %v988 = vmax.f32 %v912, 0.0
  %v989 = vmax.f32 %v917, 0.0
  %v990 = vmax.f32 %v920, 0.0
  %v991 = vmax.f32 %v925, 0.0
  %v992 = vmax.f32 %v928, 0.0
  %v993 = vmax.f32 %v933, 0.0
  %v994 = vmax.f32 %v936, 0.0
  %v995 = vmax.f32 %v941, 0.0
  %v996 = vmax.f32 %v944, 0.0
  %v997 = vmax.f32 %v949, 0.0
  %v998 = vmax.f32 %v952, 0.0
  %v999 = vmax.f32 %v957, 0.0
  %v1000 = vmax.f32 %v960, 0.0
  %v1001 = vmax.f32 %v965, 0.0
  %v1002 = vmax.f32 %v968, 0.0
  %v1003 = vpack.c.bf16 %v972, %v971
  %v1004 = vpack.c.bf16 %v974, %v973
  %v1005 = vpack.c.bf16 %v976, %v975
  %v1006 = vpack.c.bf16 %v978, %v977
  %v1007 = vpack.c.bf16 %v980, %v979
  %v1008 = vpack.c.bf16 %v982, %v981
  %v1009 = vpack.c.bf16 %v984, %v983
  %v1010 = vpack.c.bf16 %v986, %v985
  %v1011 = vpack.c.bf16 %v988, %v987
  %v1012 = vpack.c.bf16 %v990, %v989
  %v1013 = vpack.c.bf16 %v992, %v991
  %v1014 = vpack.c.bf16 %v994, %v993
  %v1015 = vpack.c.bf16 %v996, %v995
  %v1016 = vpack.c.bf16 %v998, %v997
  %v1017 = vpack.c.bf16 %v1000, %v999
  %v1018 = vpack.c.bf16 %v1002, %v1001
  %v1019 = vld [vmem:[%s7] sm:$0xf]
  %v1020 = vld [vmem:[%s7 + $0x4] sm:$0xf]
  %v1021 = vld [vmem:[%s7 + $0x8] sm:$0xf]
  %v1022 = vld [vmem:[%s7 + $0xc] sm:$0xf]
  %v1023 = vld [vmem:[%s7 + $0x10] sm:$0xf]
  %v1024 = vld [vmem:[%s7 + $0x14] sm:$0xf]
  %v1025 = vld [vmem:[%s7 + $0x18] sm:$0xf]
  %v1026 = vld [vmem:[%s7 + $0x1c] sm:$0xf]
  %v1027 = vld [vmem:[%s8] sm:$0x1]
  %v1029 = vlaneseq
  %v1030 = vshrl.u32 %v1029, 7
  %v1031 = vsub.s32 0, %v1030
  %v1032 = vrot.slane %v1027, %v1031
  %v1042 = vunpack.c.l.b16 %v1019
  %v1043 = vunpack.c.l.b16 %v1020
  %v1044 = vunpack.c.l.b16 %v1021
  %v1045 = vunpack.c.l.b16 %v1022
  %v1046 = vunpack.c.l.b16 %v1023
  %v1047 = vunpack.c.l.b16 %v1024
  %v1048 = vunpack.c.l.b16 %v1025
  %v1049 = vunpack.c.l.b16 %v1026
  %v1050 = vpack.c.b16 %v1043, %v1042
  %v1051 = vpack.c.b16 %v1045, %v1044
  %v1052 = vpack.c.b16 %v1047, %v1046
  %v1053 = vpack.c.b16 %v1049, %v1048
  %v1059 = vsel %vm465, %v1003, 0
  %v1062 = vsel %vm465, %v1004, 0
  %v1065 = vsel %vm465, %v1005, 0
  %v1068 = vsel %vm465, %v1006, 0
  %v1071 = vsel %vm465, %v1007, 0
  %v1074 = vsel %vm465, %v1008, 0
  %v1077 = vsel %vm465, %v1009, 0
  %v1080 = vsel %vm465, %v1010, 0
  %v1083 = vsel %vm465, %v1011, 0
  %v1086 = vsel %vm465, %v1012, 0
  %v1089 = vsel %vm465, %v1013, 0
  %v1092 = vsel %vm465, %v1014, 0
  %v1095 = vsel %vm465, %v1015, 0
  %v1098 = vsel %vm465, %v1016, 0
  %v1101 = vsel %vm465, %v1017, 0
  %v1104 = vsel %vm465, %v1018, 0
  %1106 = vmatprep.subr.bf16.mxu0 0
  %1107 = vmatpush1.bf16.msra.mxu0 %v1050
  %1108 = vmatprep.subr.bf16.mxu0 0
  %1109 = vmatpush1.bf16.msra.mxu0 %v1051
  %1110 = vmatprep.subr.bf16.mxu0 0
  %1111 = vmatpush1.bf16.msra.mxu0 %v1052
  %1112 = vmatprep.subr.bf16.mxu0 0
  %1113 = vmatpush1.bf16.msra.mxu0 %v1053
  %1114 = vmatprep.subr.bf16.mxu0 0
  %1115 = vmatpush1.bf16.msra.mxu0 0
  %1116 = vmatprep.subr.bf16.mxu0 0
  %1117 = vmatpush1.bf16.msra.mxu0 0
  %1118 = vmatprep.subr.bf16.mxu0 0
  %1119 = vmatpush1.bf16.msra.mxu0 0
  %1120 = vmatprep.subr.bf16.mxu0 0
  %1121 = vmatpush1.bf16.msra.mxu0 0
  %1122 = vmatprep.subr.bf16.mxu0 0
  %1123 = vmatpush1.bf16.msra.mxu0 0
  %1124 = vmatprep.subr.bf16.mxu0 0
  %1125 = vmatpush1.bf16.msra.mxu0 0
  %1126 = vmatprep.subr.bf16.mxu0 0
  %1127 = vmatpush1.bf16.msra.mxu0 0
  %1128 = vmatprep.subr.bf16.mxu0 0
  %1129 = vmatpush1.bf16.msra.mxu0 0
  %1130 = vmatprep.subr.bf16.mxu0 0
  %1131 = vmatpush1.bf16.msra.mxu0 0
  %1132 = vmatprep.subr.bf16.mxu0 0
  %1133 = vmatpush1.bf16.msra.mxu0 0
  %1134 = vmatprep.subr.bf16.mxu0 0
  %1135 = vmatpush1.bf16.msra.mxu0 0
  %1136 = vmatprep.subr.bf16.mxu0 0
  %1137 = vmatpush1.bf16.msra.mxu0 0
  %1138 = vmatprep.mubr.bf16.mxu0 0
  %1139 = vmatmul.mubr.bf16.gmra.mrb[0].mxu0 %v1059
  %v1140 = vpop.f32.mrb[0].mxu0
  %v1141 = vadd.f32 %v1032, %v1140
  %v1142 = vpop.f32.mrb[0].mxu0
  %v1143 = vpop.f32.mrb[0].mxu0
  %v1144 = vadd.f32 %v1032, %v1143
  %v1145 = vpop.f32.mrb[0].mxu0
  %1146 = vmatprep.mubr.bf16.mxu0 0
  %1147 = vmatmul.mubr.bf16.gmra.mrb[0].mxu0 %v1062
  %v1148 = vpop.f32.mrb[0].mxu0
  %v1149 = vadd.f32 %v1032, %v1148
  %v1150 = vpop.f32.mrb[0].mxu0
  %v1151 = vpop.f32.mrb[0].mxu0
  %v1152 = vadd.f32 %v1032, %v1151
  %v1153 = vpop.f32.mrb[0].mxu0
  %1154 = vmatprep.mubr.bf16.mxu0 0
  %1155 = vmatmul.mubr.bf16.gmra.mrb[0].mxu0 %v1065
  %v1156 = vpop.f32.mrb[0].mxu0
  %v1157 = vadd.f32 %v1032, %v1156
  %v1158 = vpop.f32.mrb[0].mxu0
  %v1159 = vpop.f32.mrb[0].mxu0
  %v1160 = vadd.f32 %v1032, %v1159
  %v1161 = vpop.f32.mrb[0].mxu0
  %1162 = vmatprep.mubr.bf16.mxu0 0
  %1163 = vmatmul.mubr.bf16.gmra.mrb[0].mxu0 %v1068
  %v1164 = vpop.f32.mrb[0].mxu0
  %v1165 = vadd.f32 %v1032, %v1164
  %v1166 = vpop.f32.mrb[0].mxu0
  %v1167 = vpop.f32.mrb[0].mxu0
  %v1168 = vadd.f32 %v1032, %v1167
  %v1169 = vpop.f32.mrb[0].mxu0
  %1170 = vmatprep.mubr.bf16.mxu0 0
  %1171 = vmatmul.mubr.bf16.gmra.mrb[0].mxu0 %v1071
  %v1172 = vpop.f32.mrb[0].mxu0
  %v1173 = vadd.f32 %v1032, %v1172
  %v1174 = vpop.f32.mrb[0].mxu0
  %v1175 = vpop.f32.mrb[0].mxu0
  %v1176 = vadd.f32 %v1032, %v1175
  %v1177 = vpop.f32.mrb[0].mxu0
  %1178 = vmatprep.mubr.bf16.mxu0 0
  %1179 = vmatmul.mubr.bf16.gmra.mrb[0].mxu0 %v1074
  %v1180 = vpop.f32.mrb[0].mxu0
  %v1181 = vadd.f32 %v1032, %v1180
  %v1182 = vpop.f32.mrb[0].mxu0
  %v1183 = vpop.f32.mrb[0].mxu0
  %v1184 = vadd.f32 %v1032, %v1183
  %v1185 = vpop.f32.mrb[0].mxu0
  %1186 = vmatprep.mubr.bf16.mxu0 0
  %1187 = vmatmul.mubr.bf16.gmra.mrb[0].mxu0 %v1077
  %v1188 = vpop.f32.mrb[0].mxu0
  %v1189 = vadd.f32 %v1032, %v1188
  %v1190 = vpop.f32.mrb[0].mxu0
  %v1191 = vpop.f32.mrb[0].mxu0
  %v1192 = vadd.f32 %v1032, %v1191
  %v1193 = vpop.f32.mrb[0].mxu0
  %1194 = vmatprep.mubr.bf16.mxu0 0
  %1195 = vmatmul.mubr.bf16.gmra.mrb[0].mxu0 %v1080
  %v1196 = vpop.f32.mrb[0].mxu0
  %v1197 = vadd.f32 %v1032, %v1196
  %v1198 = vpop.f32.mrb[0].mxu0
  %v1199 = vpop.f32.mrb[0].mxu0
  %v1200 = vadd.f32 %v1032, %v1199
  %v1201 = vpop.f32.mrb[0].mxu0
  %1202 = vmatprep.mubr.bf16.mxu0 0
  %1203 = vmatmul.mubr.bf16.gmra.mrb[0].mxu0 %v1083
  %v1204 = vpop.f32.mrb[0].mxu0
  %v1205 = vadd.f32 %v1032, %v1204
  %v1206 = vpop.f32.mrb[0].mxu0
  %v1207 = vpop.f32.mrb[0].mxu0
  %v1208 = vadd.f32 %v1032, %v1207
  %v1209 = vpop.f32.mrb[0].mxu0
  %1210 = vmatprep.mubr.bf16.mxu0 0
  %1211 = vmatmul.mubr.bf16.gmra.mrb[0].mxu0 %v1086
  %v1212 = vpop.f32.mrb[0].mxu0
  %v1213 = vadd.f32 %v1032, %v1212
  %v1214 = vpop.f32.mrb[0].mxu0
  %v1215 = vpop.f32.mrb[0].mxu0
  %v1216 = vadd.f32 %v1032, %v1215
  %v1217 = vpop.f32.mrb[0].mxu0
  %1218 = vmatprep.mubr.bf16.mxu0 0
  %1219 = vmatmul.mubr.bf16.gmra.mrb[0].mxu0 %v1089
  %v1220 = vpop.f32.mrb[0].mxu0
  %v1221 = vadd.f32 %v1032, %v1220
  %v1222 = vpop.f32.mrb[0].mxu0
  %v1223 = vpop.f32.mrb[0].mxu0
  %v1224 = vadd.f32 %v1032, %v1223
  %v1225 = vpop.f32.mrb[0].mxu0
  %1226 = vmatprep.mubr.bf16.mxu0 0
  %1227 = vmatmul.mubr.bf16.gmra.mrb[0].mxu0 %v1092
  %v1228 = vpop.f32.mrb[0].mxu0
  %v1229 = vadd.f32 %v1032, %v1228
  %v1230 = vpop.f32.mrb[0].mxu0
  %v1231 = vpop.f32.mrb[0].mxu0
  %v1232 = vadd.f32 %v1032, %v1231
  %v1233 = vpop.f32.mrb[0].mxu0
  %1234 = vmatprep.mubr.bf16.mxu0 0
  %1235 = vmatmul.mubr.bf16.gmra.mrb[0].mxu0 %v1095
  %v1236 = vpop.f32.mrb[0].mxu0
  %v1237 = vadd.f32 %v1032, %v1236
  %v1238 = vpop.f32.mrb[0].mxu0
  %v1239 = vpop.f32.mrb[0].mxu0
  %v1240 = vadd.f32 %v1032, %v1239
  %v1241 = vpop.f32.mrb[0].mxu0
  %1242 = vmatprep.mubr.bf16.mxu0 0
  %1243 = vmatmul.mubr.bf16.gmra.mrb[0].mxu0 %v1098
  %v1244 = vpop.f32.mrb[0].mxu0
  %v1245 = vadd.f32 %v1032, %v1244
  %v1246 = vpop.f32.mrb[0].mxu0
  %v1247 = vpop.f32.mrb[0].mxu0
  %v1248 = vadd.f32 %v1032, %v1247
  %v1249 = vpop.f32.mrb[0].mxu0
  %1250 = vmatprep.mubr.bf16.mxu0 0
  %1251 = vmatmul.mubr.bf16.gmra.mrb[0].mxu0 %v1101
  %v1252 = vpop.f32.mrb[0].mxu0
  %v1253 = vadd.f32 %v1032, %v1252
  %v1254 = vpop.f32.mrb[0].mxu0
  %v1255 = vpop.f32.mrb[0].mxu0
  %v1256 = vadd.f32 %v1032, %v1255
  %v1257 = vpop.f32.mrb[0].mxu0
  %1258 = vmatprep.mubr.bf16.mxu0 0
  %1259 = vmatmul.mubr.bf16.gmra.mrb[0].mxu0 %v1104
  %v1260 = vpop.f32.mrb[0].mxu0
  %v1261 = vadd.f32 %v1032, %v1260
  %v1262 = vpop.f32.mrb[0].mxu0
  %v1263 = vpop.f32.mrb[0].mxu0
  %v1264 = vadd.f32 %v1032, %v1263
  %v1265 = vpop.f32.mrb[0].mxu0
  %1266 = vdwg.mxu0
  %v1267 = vxor.u32 %v1141, 2147483648
  %v1268 = vxor.u32 %v1144, 2147483648
  %v1269 = vxor.u32 %v1149, 2147483648
  %v1270 = vxor.u32 %v1152, 2147483648
  %v1271 = vxor.u32 %v1157, 2147483648
  %v1272 = vxor.u32 %v1160, 2147483648
  %v1273 = vxor.u32 %v1165, 2147483648
  %v1274 = vxor.u32 %v1168, 2147483648
  %v1275 = vxor.u32 %v1173, 2147483648
  %v1276 = vxor.u32 %v1176, 2147483648
  %v1277 = vxor.u32 %v1181, 2147483648
  %v1278 = vxor.u32 %v1184, 2147483648
  %v1279 = vxor.u32 %v1189, 2147483648
  %v1280 = vxor.u32 %v1192, 2147483648
  %v1281 = vxor.u32 %v1197, 2147483648
  %v1282 = vxor.u32 %v1200, 2147483648
  %v1283 = vxor.u32 %v1205, 2147483648
  %v1284 = vxor.u32 %v1208, 2147483648
  %v1285 = vxor.u32 %v1213, 2147483648
  %v1286 = vxor.u32 %v1216, 2147483648
  %v1287 = vxor.u32 %v1221, 2147483648
  %v1288 = vxor.u32 %v1224, 2147483648
  %v1289 = vxor.u32 %v1229, 2147483648
  %v1290 = vxor.u32 %v1232, 2147483648
  %v1291 = vxor.u32 %v1237, 2147483648
  %v1292 = vxor.u32 %v1240, 2147483648
  %v1293 = vxor.u32 %v1245, 2147483648
  %v1294 = vxor.u32 %v1248, 2147483648
  %v1295 = vxor.u32 %v1253, 2147483648
  %v1296 = vxor.u32 %v1256, 2147483648
  %v1297 = vxor.u32 %v1261, 2147483648
  %v1298 = vxor.u32 %v1264, 2147483648
  %v1299 = vmul.f32 %v1267, 1.442695
  %v1300 = vpow.pop %v1299
  %v1301 = vmul.f32 %v1268, 1.442695
  %v1302 = vpow.pop %v1301
  %v1303 = vmul.f32 %v1269, 1.442695
  %v1304 = vpow.pop %v1303
  %v1305 = vmul.f32 %v1270, 1.442695
  %v1306 = vpow.pop %v1305
  %v1307 = vmul.f32 %v1271, 1.442695
  %v1308 = vpow.pop %v1307
  %v1309 = vmul.f32 %v1272, 1.442695
  %v1310 = vpow.pop %v1309
  %v1311 = vmul.f32 %v1273, 1.442695
  %v1312 = vpow.pop %v1311
  %v1313 = vmul.f32 %v1274, 1.442695
  %v1314 = vpow.pop %v1313
  %v1315 = vmul.f32 %v1275, 1.442695
  %v1316 = vpow.pop %v1315
  %v1317 = vmul.f32 %v1276, 1.442695
  %v1318 = vpow.pop %v1317
  %v1319 = vmul.f32 %v1277, 1.442695
  %v1320 = vpow.pop %v1319
  %v1321 = vmul.f32 %v1278, 1.442695
  %v1322 = vpow.pop %v1321
  %v1323 = vmul.f32 %v1279, 1.442695
  %v1324 = vpow.pop %v1323
  %v1325 = vmul.f32 %v1280, 1.442695
  %v1326 = vpow.pop %v1325
  %v1327 = vmul.f32 %v1281, 1.442695
  %v1328 = vpow.pop %v1327
  %v1329 = vmul.f32 %v1282, 1.442695
  %v1330 = vpow.pop %v1329
  %v1331 = vmul.f32 %v1283, 1.442695
  %v1332 = vpow.pop %v1331
  %v1333 = vmul.f32 %v1284, 1.442695
  %v1334 = vpow.pop %v1333
  %v1335 = vmul.f32 %v1285, 1.442695
  %v1336 = vpow.pop %v1335
  %v1337 = vmul.f32 %v1286, 1.442695
  %v1338 = vpow.pop %v1337
  %v1339 = vmul.f32 %v1287, 1.442695
  %v1340 = vpow.pop %v1339
  %v1341 = vmul.f32 %v1288, 1.442695
  %v1342 = vpow.pop %v1341
  %v1343 = vmul.f32 %v1289, 1.442695
  %v1344 = vpow.pop %v1343
  %v1345 = vmul.f32 %v1290, 1.442695
  %v1346 = vpow.pop %v1345
  %v1347 = vmul.f32 %v1291, 1.442695
  %v1348 = vpow.pop %v1347
  %v1349 = vmul.f32 %v1292, 1.442695
  %v1350 = vpow.pop %v1349
  %v1351 = vmul.f32 %v1293, 1.442695
  %v1352 = vpow.pop %v1351
  %v1353 = vmul.f32 %v1294, 1.442695
  %v1354 = vpow.pop %v1353
  %v1355 = vmul.f32 %v1295, 1.442695
  %v1356 = vpow.pop %v1355
  %v1357 = vmul.f32 %v1296, 1.442695
  %v1358 = vpow.pop %v1357
  %v1359 = vmul.f32 %v1297, 1.442695
  %v1360 = vpow.pop %v1359
  %v1361 = vmul.f32 %v1298, 1.442695
  %v1362 = vpow.pop %v1361
  %v1363 = vadd.f32 %v1300, 1.0
  %v1364 = vadd.f32 %v1302, 1.0
  %v1365 = vadd.f32 %v1304, 1.0
  %v1366 = vadd.f32 %v1306, 1.0
  %v1367 = vadd.f32 %v1308, 1.0
  %v1368 = vadd.f32 %v1310, 1.0
  %v1369 = vadd.f32 %v1312, 1.0
  %v1370 = vadd.f32 %v1314, 1.0
  %v1371 = vadd.f32 %v1316, 1.0
  %v1372 = vadd.f32 %v1318, 1.0
  %v1373 = vadd.f32 %v1320, 1.0
  %v1374 = vadd.f32 %v1322, 1.0
  %v1375 = vadd.f32 %v1324, 1.0
  %v1376 = vadd.f32 %v1326, 1.0
  %v1377 = vadd.f32 %v1328, 1.0
  %v1378 = vadd.f32 %v1330, 1.0
  %v1379 = vadd.f32 %v1332, 1.0
  %v1380 = vadd.f32 %v1334, 1.0
  %v1381 = vadd.f32 %v1336, 1.0
  %v1382 = vadd.f32 %v1338, 1.0
  %v1383 = vadd.f32 %v1340, 1.0
  %v1384 = vadd.f32 %v1342, 1.0
  %v1385 = vadd.f32 %v1344, 1.0
  %v1386 = vadd.f32 %v1346, 1.0
  %v1387 = vadd.f32 %v1348, 1.0
  %v1388 = vadd.f32 %v1350, 1.0
  %v1389 = vadd.f32 %v1352, 1.0
  %v1390 = vadd.f32 %v1354, 1.0
  %v1391 = vadd.f32 %v1356, 1.0
  %v1392 = vadd.f32 %v1358, 1.0
  %v1393 = vadd.f32 %v1360, 1.0
  %v1394 = vadd.f32 %v1362, 1.0
  %v1395 = vrcp.pop %v1363
  %v1396 = vmul.f32 1.0, %v1395
  %v1397 = vrcp.pop %v1364
  %v1398 = vmul.f32 1.0, %v1397
  %v1399 = vrcp.pop %v1365
  %v1400 = vmul.f32 1.0, %v1399
  %v1401 = vrcp.pop %v1366
  %v1402 = vmul.f32 1.0, %v1401
  %v1403 = vrcp.pop %v1367
  %v1404 = vmul.f32 1.0, %v1403
  %v1405 = vrcp.pop %v1368
  %v1406 = vmul.f32 1.0, %v1405
  %v1407 = vrcp.pop %v1369
  %v1408 = vmul.f32 1.0, %v1407
  %v1409 = vrcp.pop %v1370
  %v1410 = vmul.f32 1.0, %v1409
  %v1411 = vrcp.pop %v1371
  %v1412 = vmul.f32 1.0, %v1411
  %v1413 = vrcp.pop %v1372
  %v1414 = vmul.f32 1.0, %v1413
  %v1415 = vrcp.pop %v1373
  %v1416 = vmul.f32 1.0, %v1415
  %v1417 = vrcp.pop %v1374
  %v1418 = vmul.f32 1.0, %v1417
  %v1419 = vrcp.pop %v1375
  %v1420 = vmul.f32 1.0, %v1419
  %v1421 = vrcp.pop %v1376
  %v1422 = vmul.f32 1.0, %v1421
  %v1423 = vrcp.pop %v1377
  %v1424 = vmul.f32 1.0, %v1423
  %v1425 = vrcp.pop %v1378
  %v1426 = vmul.f32 1.0, %v1425
  %v1427 = vrcp.pop %v1379
  %v1428 = vmul.f32 1.0, %v1427
  %v1429 = vrcp.pop %v1380
  %v1430 = vmul.f32 1.0, %v1429
  %v1431 = vrcp.pop %v1381
  %v1432 = vmul.f32 1.0, %v1431
  %v1433 = vrcp.pop %v1382
  %v1434 = vmul.f32 1.0, %v1433
  %v1435 = vrcp.pop %v1383
  %v1436 = vmul.f32 1.0, %v1435
  %v1437 = vrcp.pop %v1384
  %v1438 = vmul.f32 1.0, %v1437
  %v1439 = vrcp.pop %v1385
  %v1440 = vmul.f32 1.0, %v1439
  %v1441 = vrcp.pop %v1386
  %v1442 = vmul.f32 1.0, %v1441
  %v1443 = vrcp.pop %v1387
  %v1444 = vmul.f32 1.0, %v1443
  %v1445 = vrcp.pop %v1388
  %v1446 = vmul.f32 1.0, %v1445
  %v1447 = vrcp.pop %v1389
  %v1448 = vmul.f32 1.0, %v1447
  %v1449 = vrcp.pop %v1390
  %v1450 = vmul.f32 1.0, %v1449
  %v1451 = vrcp.pop %v1391
  %v1452 = vmul.f32 1.0, %v1451
  %v1453 = vrcp.pop %v1392
  %v1454 = vmul.f32 1.0, %v1453
  %v1455 = vrcp.pop %v1393
  %v1456 = vmul.f32 1.0, %v1455
  %v1457 = vrcp.pop %v1394
  %v1458 = vmul.f32 1.0, %v1457
  %1459 = vst [vmem:[%s9] sm:$0xff] %v1396
  %1460 = vst [vmem:[%s9 + $0x8] sm:$0xff] %v1398
  %1461 = vst [vmem:[%s9 + $0x10] sm:$0xff] %v1400
  %1462 = vst [vmem:[%s9 + $0x18] sm:$0xff] %v1402
  %1463 = vst [vmem:[%s9 + $0x20] sm:$0xff] %v1404
  %1464 = vst [vmem:[%s9 + $0x28] sm:$0xff] %v1406
  %1465 = vst [vmem:[%s9 + $0x30] sm:$0xff] %v1408
  %1466 = vst [vmem:[%s9 + $0x38] sm:$0xff] %v1410
  %1467 = vst [vmem:[%s9 + $0x40] sm:$0xff] %v1412
  %1468 = vst [vmem:[%s9 + $0x48] sm:$0xff] %v1414
  %1469 = vst [vmem:[%s9 + $0x50] sm:$0xff] %v1416
  %1470 = vst [vmem:[%s9 + $0x58] sm:$0xff] %v1418
  %1471 = vst [vmem:[%s9 + $0x60] sm:$0xff] %v1420
  %1472 = vst [vmem:[%s9 + $0x68] sm:$0xff] %v1422
  %1473 = vst [vmem:[%s9 + $0x70] sm:$0xff] %v1424
  %1474 = vst [vmem:[%s9 + $0x78] sm:$0xff] %v1426
  %1475 = vst [vmem:[%s9 + $0x80] sm:$0xff] %v1428
  %1476 = vst [vmem:[%s9 + $0x88] sm:$0xff] %v1430
  %1477 = vst [vmem:[%s9 + $0x90] sm:$0xff] %v1432
  %1478 = vst [vmem:[%s9 + $0x98] sm:$0xff] %v1434
  %1479 = vst [vmem:[%s9 + $0xa0] sm:$0xff] %v1436
  %1480 = vst [vmem:[%s9 + $0xa8] sm:$0xff] %v1438
  %1481 = vst [vmem:[%s9 + $0xb0] sm:$0xff] %v1440
  %1482 = vst [vmem:[%s9 + $0xb8] sm:$0xff] %v1442
  %1483 = vst [vmem:[%s9 + $0xc0] sm:$0xff] %v1444
  %1484 = vst [vmem:[%s9 + $0xc8] sm:$0xff] %v1446
  %1485 = vst [vmem:[%s9 + $0xd0] sm:$0xff] %v1448
  %1486 = vst [vmem:[%s9 + $0xd8] sm:$0xff] %v1450
  %1487 = vst [vmem:[%s9 + $0xe0] sm:$0xff] %v1452
  %1488 = vst [vmem:[%s9 + $0xe8] sm:$0xff] %v1454
  %1489 = vst [vmem:[%s9 + $0xf0] sm:$0xff] %v1456
  %1490 = vst [vmem:[%s9 + $0xf8] sm:$0xff] %v1458
  // Predicated region
  $region38: #{mlp_forward.1} parent=0 // pred_check
    _
  $region39: #{mlp_forward.1} parent=0 // pred_check_branch
    %1492 = sbr.rel (0) target = $region41
  $region40: #{mlp_forward.1} parent=0 // pred_region
    _
  $region41: #{mlp_forward.1} parent=0 // pred_fallthru
    _
  // Predicated region
  $region42: #{mlp_forward.1} parent=0 // pred_check
    _
  $region43: #{mlp_forward.1} parent=0 // pred_check_branch
    %1494 = sbr.rel (0) target = $region45
  $region44: #{mlp_forward.1} parent=0 // pred_region
    _
  $region45: #{mlp_forward.1} parent=0 // pred_fallthru
    _

</llo_original>
